<compile_context>
chip_gen: v5e
topology: v5e:2x2
jax: 0.10.0
libtpu: 0.0.40
codegen_flags: <defaults>
</compile_context>

<pallas_src>
from functools import partial

import jax
import jax.numpy as jnp
from jax.experimental import pallas as pl
from jax.experimental.pallas import tpu as pltpu

EMB = 32  # every nn.Linear(*, 32) / nn.Embedding(*, 32) output width


# --------------------------------------------------------------------------- kernel ----
def _ant_policy_kernel(x_ref, w_main_ref, w_disc_ref, w_head_ref, b_ref, out_ref):
    f32 = jnp.float32
    x = x_ref[...]                       # (T, H+8): [h_masked | pg | dgps | cmp | idx | pad]
    T = x.shape[0]
    H = w_head_ref.shape[0]
    A = w_head_ref.shape[1] - 1
    ND = w_disc_ref.shape[0]             # 10 combined (prev_action, bump) rows

    h_masked = x[:, 0:H]                                        # masks * h (done in wrapper)
    idx = x[:, H + 6:H + 7].astype(jnp.int32)                   # combined discrete index

    # one-hot of the combined (prev_action, bump) index -> small MXU row gather
    oh = (jax.lax.broadcasted_iota(jnp.int32, (T, ND), 1) == idx).astype(f32)

    b_pre = b_ref[0:1, :]                                       # (1, 4H) folded biases
    b_head = b_ref[1:2, 0:1 + A]                                # (1, 1+A)

    # ONE fused gate matmul (continuous obs + hidden) + one small one-hot matmul.
    # Columns: [r_pre | z_pre | gi_n | gh_n] -> exactly 4H = 128 lanes (lane-dense vregs).
    g = (jnp.dot(x, w_main_ref[...], preferred_element_type=f32)
         + jnp.dot(oh, w_disc_ref[...], preferred_element_type=f32)
         + b_pre)                                               # (T, 4H)

    # PyTorch GRU cell (gate order r, z, n), single layer, single step
    r = jax.nn.sigmoid(g[:, 0:H])
    z = jax.nn.sigmoid(g[:, H:2 * H])
    n = jnp.tanh(g[:, 2 * H:3 * H] + r * g[:, 3 * H:4 * H])
    h_new = (1.0 - z) * n + z * h_masked                        # (T, H)

    # fused heads: [critic | action logits]
    heads = jnp.dot(h_new, w_head_ref[...], preferred_element_type=f32) + b_head
    value = heads[:, 0:1]
    logits = heads[:, 1:1 + A]

    # stable log-softmax, entropy, deterministic action (first argmax), chosen log-prob
    lmax = jnp.max(logits, axis=-1, keepdims=True)
    shifted = logits - lmax
    lse = jnp.log(jnp.sum(jnp.exp(shifted), axis=-1, keepdims=True))
    logp = shifted - lse
    ent = -jnp.sum(jnp.exp(logp) * logp, axis=-1, keepdims=True)

    lane = jax.lax.broadcasted_iota(jnp.int32, (T, A), 1)
    act_idx = jnp.min(jnp.where(logits >= lmax, lane, A), axis=-1, keepdims=True)
    chosen = jnp.sum(jnp.where(lane == act_idx, logp, 0.0), axis=-1, keepdims=True)

    # single packed output block, written with ONE full-width store
    out_ref[...] = jnp.concatenate(
        [h_new, value, ent, chosen, act_idx.astype(f32), logp], axis=1)


# ------------------------------------------------------------------------ parameters ----
def init_params(key, n_goal=2, n_compass=2, n_dgps=2, hidden=32, n_actions=4):
    """Deterministic synthetic init (orthogonal init approximated by scaled normal;
    all biases zero, matching Net.layer_init)."""
    f32 = jnp.float32
    ks = jax.random.split(key, 13)
    rnn_in = 5 * EMB

    def nrm(k, shape, scale):
        return scale * jax.random.normal(k, shape, f32)

    rnn_scale = 1.0 / float(jnp.sqrt(rnn_in))
    hh_scale = 1.0 / float(jnp.sqrt(hidden))
    return {
        'w_tgt': nrm(ks[0], (n_goal, EMB), 0.01), 'b_tgt': jnp.zeros((1, EMB), f32),
        'w_cmp': nrm(ks[1], (n_compass, EMB), 0.01), 'b_cmp': jnp.zeros((1, EMB), f32),
        'w_dgps': nrm(ks[2], (n_dgps, EMB), 0.01), 'b_dgps': jnp.zeros((1, EMB), f32),
        'emb_prev': nrm(ks[3], (5, EMB), 1.0),
        'emb_bump': nrm(ks[4], (2, EMB), 1.0),
        'w_ih_r': nrm(ks[5], (rnn_in, hidden), rnn_scale),
        'w_ih_z': nrm(ks[6], (rnn_in, hidden), rnn_scale),
        'w_ih_n': nrm(ks[7], (rnn_in, hidden), rnn_scale),
        'w_hh_r': nrm(ks[8], (hidden, hidden), hh_scale),
        'w_hh_z': nrm(ks[9], (hidden, hidden), hh_scale),
        'w_hh_n': nrm(ks[10], (hidden, hidden), hh_scale),
        'b_ih_r': jnp.zeros((1, hidden), f32), 'b_ih_z': jnp.zeros((1, hidden), f32),
        'b_ih_n': jnp.zeros((1, hidden), f32),
        'b_hh_r': jnp.zeros((1, hidden), f32), 'b_hh_z': jnp.zeros((1, hidden), f32),
        'b_hh_n': jnp.zeros((1, hidden), f32),
        'w_critic': nrm(ks[11], (hidden, 1), 0.01), 'b_critic': jnp.zeros((1, 1), f32),
        'w_act': nrm(ks[12], (hidden, n_actions), 0.01),
        'b_act': jnp.zeros((1, n_actions), f32),
    }


def fuse_params(p):
    """Host-side algebraic pre-composition (done once, exactly equivalent):
       w_main : (H+8, 4H)  rows = [hidden(H) | pointgoal(2) | delta_gps(2) | compass(2) | 0 | 0]
       w_disc : (10, 4H)   row a*2+b = prev_action-emb a + bump-emb b pushed through W_ih
       w_head : (H, 1+A)   [critic | action logits]
       b_all  : (2, 4H)    row 0 = folded gate pre-activation bias, row 1 = head bias
       gate column layout everywhere: [r_pre | z_pre | gi_n | gh_n]."""
    f32 = jnp.float32
    H = p['w_hh_r'].shape[0]
    A = p['w_act'].shape[1]
    assert 1 + A <= 4 * H

    # rnn_input layout in forward(): [tgt | prev_action | bump | delta_gps | compass]
    def gate_blocks(w):
        return dict(tgt=w[0 * EMB:1 * EMB], pa=w[1 * EMB:2 * EMB], bump=w[2 * EMB:3 * EMB],
                    dgps=w[3 * EMB:4 * EMB], cmp=w[4 * EMB:5 * EMB])

    Wr, Wz, Wn = gate_blocks(p['w_ih_r']), gate_blocks(p['w_ih_z']), gate_blocks(p['w_ih_n'])

    def zeros_h(rows):
        return jnp.zeros((rows, H), f32)

    def cont_rows(w_lin, key):   # linear-embed weight pre-composed into 4-gate row block
        return jnp.concatenate([w_lin @ Wr[key], w_lin @ Wz[key], w_lin @ Wn[key],
                                zeros_h(w_lin.shape[0])], axis=1)

    hid_rows = jnp.concatenate([p['w_hh_r'], p['w_hh_z'], zeros_h(H), p['w_hh_n']], axis=1)

    w_main = jnp.concatenate([
        hid_rows,                                   # lanes 0:H      of the packed input
        cont_rows(p['w_tgt'], 'tgt'),               # pointgoal
        cont_rows(p['w_dgps'], 'dgps'),             # delta_gps
        cont_rows(p['w_cmp'], 'cmp'),               # compass
        jnp.zeros((2, 4 * H), f32),                 # idx + pad lanes contribute nothing
    ], axis=0)                                      # (H + 8, 4H)

    def disc_rows(emb, key):
        return jnp.concatenate([emb @ Wr[key], emb @ Wz[key], emb @ Wn[key],
                                zeros_h(emb.shape[0])], axis=1)

    w_pa = disc_rows(p['emb_prev'], 'pa')           # (5, 4H)
    w_bump = disc_rows(p['emb_bump'], 'bump')       # (2, 4H)
    w_disc = (w_pa[:, None, :] + w_bump[None, :, :]).reshape(10, 4 * H)

    def bias_gate(Wg, bg):                          # fold embed biases + GRU input bias
        return (p['b_tgt'] @ Wg['tgt'] + p['b_dgps'] @ Wg['dgps']
                + p['b_cmp'] @ Wg['cmp'] + bg)

    b_in_r = bias_gate(Wr, p['b_ih_r'])
    b_in_z = bias_gate(Wz, p['b_ih_z'])
    b_in_n = bias_gate(Wn, p['b_ih_n'])
    b_pre = jnp.concatenate([b_in_r + p['b_hh_r'], b_in_z + p['b_hh_z'],
                             b_in_n, p['b_hh_n']], axis=1)            # (1, 4H)

    w_head = jnp.concatenate([p['w_critic'], p['w_act']], axis=1)     # (H, 1+A)
    b_head_row = jnp.zeros((1, 4 * H), f32).at[:, 0:1 + A].set(
        jnp.concatenate([p['b_critic'], p['b_act']], axis=1))
    b_all = jnp.concatenate([b_pre, b_head_row], axis=0)              # (2, 4H)

    return {'w_main': w_main.astype(f32), 'w_disc': w_disc.astype(f32),
            'w_head': w_head.astype(f32), 'b_all': b_all.astype(f32)}


# --------------------------------------------------------------------------- wrapper ----
def _round_up(x, m):
    return ((x + m - 1) // m) * m


def _choose_tile(n):
    """Batch tile: big (grid-step overhead ~0.35us dominates small tiles), multiple of 8,
    capped at 4096 rows, and split so large batches get >=2 'parallel' grid steps so
    v7x's two TensorCores are both used."""
    n8 = _round_up(n, 8)
    if n8 <= 1024:
        return n8
    return min(4096, _round_up((n8 + 1) // 2, 8))


@partial(jax.jit, static_argnames=("deterministic",))
def ant_policy_act(observations, rnn_hidden_states, prev_actions, masks, fused,
                   deterministic=True):
    """Equivalent of AntPolicy.act (inference branch of forward_rnn)."""
    f32 = jnp.float32
    pg = observations['pointgoal'].astype(f32)
    dg = observations['delta_gps'].astype(f32)
    cmp_ = observations['compass'].astype(f32)
    N = pg.shape[0]
    bump = observations['bump'].astype(jnp.int32).reshape(N, 1)
    pa = prev_actions.astype(jnp.int32).reshape(N, 1)
    m = masks.astype(f32).reshape(N, 1)

    H = rnn_hidden_states.shape[-1]
    A = fused['w_head'].shape[1] - 1
    h0 = rnn_hidden_states.reshape(N, H).astype(f32)      # single-layer GRU: (1, N, H)

    # tiny prologue (fused by XLA): _mask_hidden, combined discrete index, one packed input
    h_masked = m * h0
    idx = ((((pa + 1) * m.astype(jnp.int32)) * 2) + bump).astype(f32)   # in [0, 10)
    x_packed = jnp.concatenate(
        [h_masked, pg, dg, cmp_, idx, jnp.zeros((N, 1), f32)], axis=1)  # (N, H+8)

    W_IN = H + 8
    W_OUT = H + 4 + A

    TILE = _choose_tile(N)
    Npad = _round_up(N, TILE)
    if Npad != N:
        x_packed = jnp.pad(x_packed, ((0, Npad - N), (0, 0)))

    out = pl.pallas_call(
        _ant_policy_kernel,
        grid=(Npad // TILE,),
        in_specs=[
            pl.BlockSpec((TILE, W_IN), lambda i: (i, 0)),
            pl.BlockSpec(fused['w_main'].shape, lambda i: (0, 0)),
            pl.BlockSpec(fused['w_disc'].shape, lambda i: (0, 0)),
            pl.BlockSpec(fused['w_head'].shape, lambda i: (0, 0)),
            pl.BlockSpec(fused['b_all'].shape, lambda i: (0, 0)),
        ],
        out_specs=pl.BlockSpec((TILE, W_OUT), lambda i: (i, 0)),
        out_shape=jax.ShapeDtypeStruct((Npad, W_OUT), f32),
        compiler_params=pltpu.CompilerParams(dimension_semantics=("parallel",)),
    )(x_packed, fused['w_main'], fused['w_disc'], fused['w_head'], fused['b_all'])

    out = out[:N]
    h_new = out[:, 0:H]
    value = out[:, H:H + 1]
    entropy = out[:, H + 1:H + 2]
    action_log_probs = out[:, H + 2:H + 3]
    action = out[:, H + 3:H + 4].astype(jnp.int32)
    # (full per-action log-probs are available at out[:, H+4:H+4+A] if needed)
    return value, action, action_log_probs, entropy, h_new.reshape(1, N, H), h_new


# ------------------------------------------------------------------------------ main ----
if __name__ == "__main__":
    root = jax.random.PRNGKey(0)
    k_params, k_pg, k_cmp, k_dg, k_bump, k_pa, k_mask, k_h = jax.random.split(root, 8)

    N, H, A = 8, 32, 4  # batch=8, hidden=32, 4 discrete actions
    params = init_params(k_params, n_goal=2, n_compass=2, n_dgps=2, hidden=H, n_actions=A)
    fused = fuse_params(params)

    observations = {
        'pointgoal': jax.random.normal(k_pg, (N, 2), jnp.float32),
        'compass': jax.random.normal(k_cmp, (N, 2), jnp.float32),
        'delta_gps': jax.random.normal(k_dg, (N, 2), jnp.float32),
        'bump': jax.random.randint(k_bump, (N, 1), 0, 2).astype(jnp.float32),
    }
    prev_actions = jax.random.randint(k_pa, (N, 1), 0, A)
    masks = (jax.random.uniform(k_mask, (N, 1)) > 0.3).astype(jnp.float32)
    rnn_hidden_states = jax.random.normal(k_h, (1, N, H), jnp.float32)

    outs = ant_policy_act(observations, rnn_hidden_states, prev_actions, masks, fused,
                          deterministic=True)
    jax.block_until_ready(outs)
    value, action, action_log_probs, entropy, new_hidden, feat = outs
    assert value.shape == (N, 1) and action.shape == (N, 1)
    assert action.dtype == jnp.int32
    assert bool(jnp.all((action >= 0) & (action < A)))
    assert action_log_probs.shape == (N, 1) and entropy.shape == (N, 1)
    assert new_hidden.shape == (1, N, H) and feat.shape == (N, H)
    assert bool(jnp.all(jnp.isfinite(value))) and bool(jnp.all(jnp.isfinite(feat)))
    assert bool(jnp.all(jnp.isfinite(action_log_probs))) and bool(jnp.all(entropy >= 0))
    print("KERNEL_OK")
</pallas_src>

<mosaic_0001>
module attributes {stable_mosaic.version = 11 : i64} {
  func.func @_ant_policy_kernel(%arg0: i32, %arg1: memref<8x40xf32, #tpu.memory_space<vmem>>, %arg2: memref<40x128xf32, #tpu.memory_space<vmem>>, %arg3: memref<10x128xf32, #tpu.memory_space<vmem>>, %arg4: memref<32x5xf32, #tpu.memory_space<vmem>>, %arg5: memref<2x128xf32, #tpu.memory_space<vmem>>, %arg6: memref<8x40xf32, #tpu.memory_space<vmem>>) attributes {dimension_semantics = [#tpu.dimension_semantics<parallel>], iteration_bounds = array<i64: 1>, scalar_prefetch = 0 : i64, scratch_operands = 0 : i64, tpu.core_type = #tpu.core_type<tc>, window_params = [{transform_indices = @transform_0, window_bounds = array<i64: 8, 40>}, {pipeline_mode = #tpu.pipeline_mode<synchronous>, transform_indices = @transform_1, window_bounds = array<i64: 40, 128>}, {pipeline_mode = #tpu.pipeline_mode<synchronous>, transform_indices = @transform_2, window_bounds = array<i64: 10, 128>}, {pipeline_mode = #tpu.pipeline_mode<synchronous>, transform_indices = @transform_3, window_bounds = array<i64: 32, 5>}, {pipeline_mode = #tpu.pipeline_mode<synchronous>, transform_indices = @transform_4, window_bounds = array<i64: 2, 128>}, {transform_indices = @transform_5, window_bounds = array<i64: 8, 40>}]} {
    %c0 = arith.constant 0 : index
    %c0_0 = arith.constant 0 : index
    %0 = vector.load %arg1[%c0, %c0_0] : memref<8x40xf32, #tpu.memory_space<vmem>>, vector<8x40xf32>
    %1 = vector.extract_strided_slice %0 {offsets = [0, 0], sizes = [8, 32], strides = [1, 1]} : vector<8x40xf32> to vector<8x32xf32>
    %2 = vector.extract_strided_slice %0 {offsets = [0, 38], sizes = [8, 1], strides = [1, 1]} : vector<8x40xf32> to vector<8x1xf32>
    %3 = arith.fptosi %2 : vector<8x1xf32> to vector<8x1xi32>
    %4 = tpu.iota {dimensions = array<i32: 1>} : vector<8x10xi32>
    %5 = vector.broadcast %3 : vector<8x1xi32> to vector<8x10xi32>
    %6 = arith.cmpi eq, %4, %5 : vector<8x10xi32>
    %7 = arith.extui %6 : vector<8x10xi1> to vector<8x10xi32>
    %8 = arith.sitofp %7 : vector<8x10xi32> to vector<8x10xf32>
    %c0_1 = arith.constant 0 : index
    %c0_2 = arith.constant 0 : index
    %9 = vector.load %arg5[%c0_1, %c0_2] : memref<2x128xf32, #tpu.memory_space<vmem>>, vector<1x128xf32>
    %c1 = arith.constant 1 : index
    %c0_3 = arith.constant 0 : index
    %10 = vector.load %arg5[%c1, %c0_3] : memref<2x128xf32, #tpu.memory_space<vmem>>, vector<1x5xf32>
    %c0_4 = arith.constant 0 : index
    %c0_5 = arith.constant 0 : index
    %11 = vector.load %arg2[%c0_4, %c0_5] : memref<40x128xf32, #tpu.memory_space<vmem>>, vector<40x128xf32>
    %cst = arith.constant dense<0.000000e+00> : vector<8x128xf32>
    %12 = tpu.matmul %0, %11, %cst {dimension_numbers = #tpu.dot_dimension_numbers<[1], [0], [0], [1], [0, 0, 1, 1], [], []>} : vector<8x40xf32>, vector<40x128xf32>, vector<8x128xf32> -> vector<8x128xf32>
    %c0_6 = arith.constant 0 : index
    %c0_7 = arith.constant 0 : index
    %13 = vector.load %arg3[%c0_6, %c0_7] : memref<10x128xf32, #tpu.memory_space<vmem>>, vector<10x128xf32>
    %cst_8 = arith.constant dense<0.000000e+00> : vector<8x128xf32>
    %14 = tpu.matmul %8, %13, %cst_8 {dimension_numbers = #tpu.dot_dimension_numbers<[1], [0], [0], [1], [0, 0, 1, 1], [], []>} : vector<8x10xf32>, vector<10x128xf32>, vector<8x128xf32> -> vector<8x128xf32>
    %15 = arith.addf %12, %14 : vector<8x128xf32>
    %16 = vector.broadcast %9 : vector<1x128xf32> to vector<8x128xf32>
    %17 = arith.addf %15, %16 : vector<8x128xf32>
    %18 = vector.extract_strided_slice %17 {offsets = [0, 0], sizes = [8, 32], strides = [1, 1]} : vector<8x128xf32> to vector<8x32xf32>
    %19 = arith.negf %18 : vector<8x32xf32>
    %20 = math.exp %19 : vector<8x32xf32>
    %cst_9 = arith.constant 1.000000e+00 : f32
    %21 = vector.broadcast %cst_9 : f32 to vector<8x32xf32>
    %22 = arith.addf %21, %20 : vector<8x32xf32>
    %23 = arith.divf %21, %22 : vector<8x32xf32>
    %24 = vector.extract_strided_slice %17 {offsets = [0, 32], sizes = [8, 32], strides = [1, 1]} : vector<8x128xf32> to vector<8x32xf32>
    %25 = arith.negf %24 : vector<8x32xf32>
    %26 = math.exp %25 : vector<8x32xf32>
    %cst_10 = arith.constant 1.000000e+00 : f32
    %27 = vector.broadcast %cst_10 : f32 to vector<8x32xf32>
    %28 = arith.addf %27, %26 : vector<8x32xf32>
    %29 = arith.divf %27, %28 : vector<8x32xf32>
    %30 = vector.extract_strided_slice %17 {offsets = [0, 64], sizes = [8, 32], strides = [1, 1]} : vector<8x128xf32> to vector<8x32xf32>
    %31 = vector.extract_strided_slice %17 {offsets = [0, 96], sizes = [8, 32], strides = [1, 1]} : vector<8x128xf32> to vector<8x32xf32>
    %32 = arith.mulf %23, %31 : vector<8x32xf32>
    %33 = arith.addf %30, %32 : vector<8x32xf32>
    %34 = math.tanh %33 : vector<8x32xf32>
    %cst_11 = arith.constant 1.000000e+00 : f32
    %35 = vector.broadcast %cst_11 : f32 to vector<8x32xf32>
    %36 = arith.subf %35, %29 : vector<8x32xf32>
    %37 = arith.mulf %36, %34 : vector<8x32xf32>
    %38 = arith.mulf %29, %1 : vector<8x32xf32>
    %39 = arith.addf %37, %38 : vector<8x32xf32>
    %c0_12 = arith.constant 0 : index
    %c0_13 = arith.constant 0 : index
    %40 = vector.load %arg4[%c0_12, %c0_13] : memref<32x5xf32, #tpu.memory_space<vmem>>, vector<32x5xf32>
    %cst_14 = arith.constant dense<0.000000e+00> : vector<8x5xf32>
    %41 = tpu.matmul %39, %40, %cst_14 {dimension_numbers = #tpu.dot_dimension_numbers<[1], [0], [0], [1], [0, 0, 1, 1], [], []>} : vector<8x32xf32>, vector<32x5xf32>, vector<8x5xf32> -> vector<8x5xf32>
    %42 = vector.broadcast %10 : vector<1x5xf32> to vector<8x5xf32>
    %43 = arith.addf %41, %42 : vector<8x5xf32>
    %44 = vector.extract_strided_slice %43 {offsets = [0, 0], sizes = [8, 1], strides = [1, 1]} : vector<8x5xf32> to vector<8x1xf32>
    %45 = vector.extract_strided_slice %43 {offsets = [0, 1], sizes = [8, 4], strides = [1, 1]} : vector<8x5xf32> to vector<8x4xf32>
    %cst_15 = arith.constant dense<0xFF800000> : vector<8xf32>
    %46 = vector.multi_reduction <maximumf>, %45, %cst_15 [1] : vector<8x4xf32> to vector<8xf32>
    %47 = vector.shape_cast %46 : vector<8xf32> to vector<8x1xf32>
    %48 = vector.broadcast %47 : vector<8x1xf32> to vector<8x4xf32>
    %49 = arith.subf %45, %48 : vector<8x4xf32>
    %50 = math.exp %49 : vector<8x4xf32>
    %cst_16 = arith.constant dense<0.000000e+00> : vector<8xf32>
    %51 = vector.multi_reduction <add>, %50, %cst_16 [1] : vector<8x4xf32> to vector<8xf32>
    %52 = vector.shape_cast %51 : vector<8xf32> to vector<8x1xf32>
    %53 = math.log %52 : vector<8x1xf32>
    %54 = vector.broadcast %53 : vector<8x1xf32> to vector<8x4xf32>
    %55 = arith.subf %49, %54 : vector<8x4xf32>
    %56 = math.exp %55 : vector<8x4xf32>
    %57 = arith.mulf %56, %55 : vector<8x4xf32>
    %cst_17 = arith.constant dense<0.000000e+00> : vector<8xf32>
    %58 = vector.multi_reduction <add>, %57, %cst_17 [1] : vector<8x4xf32> to vector<8xf32>
    %59 = vector.shape_cast %58 : vector<8xf32> to vector<8x1xf32>
    %cst_18 = arith.constant 0.000000e+00 : f32
    %60 = vector.broadcast %cst_18 : f32 to vector<8x1xf32>
    %61 = arith.subf %60, %59 : vector<8x1xf32>
    %62 = tpu.iota {dimensions = array<i32: 1>} : vector<8x4xi32>
    %63 = vector.broadcast %47 : vector<8x1xf32> to vector<8x4xf32>
    %64 = arith.cmpf oge, %45, %63 : vector<8x4xf32>
    %c4_i32 = arith.constant 4 : i32
    %65 = vector.broadcast %c4_i32 : i32 to vector<8x4xi32>
    %66 = arith.select %64, %62, %65 : vector<8x4xi1>, vector<8x4xi32>
    %cst_19 = arith.constant dense<2147483647> : vector<8xi32>
    %67 = vector.multi_reduction <minsi>, %66, %cst_19 [1] : vector<8x4xi32> to vector<8xi32>
    %68 = vector.shape_cast %67 : vector<8xi32> to vector<8x1xi32>
    %69 = vector.broadcast %68 : vector<8x1xi32> to vector<8x4xi32>
    %70 = arith.cmpi eq, %62, %69 : vector<8x4xi32>
    %cst_20 = arith.constant 0.000000e+00 : f32
    %71 = vector.broadcast %cst_20 : f32 to vector<8x4xf32>
    %72 = arith.select %70, %55, %71 : vector<8x4xi1>, vector<8x4xf32>
    %cst_21 = arith.constant dense<0.000000e+00> : vector<8xf32>
    %73 = vector.multi_reduction <add>, %72, %cst_21 [1] : vector<8x4xf32> to vector<8xf32>
    %74 = vector.shape_cast %73 : vector<8xf32> to vector<8x1xf32>
    %75 = arith.sitofp %68 : vector<8x1xi32> to vector<8x1xf32>
    %76 = tpu.concatenate %39, %44, %61, %74, %75, %55 in 1 : vector<8x32xf32>, vector<8x1xf32>, vector<8x1xf32>, vector<8x1xf32>, vector<8x1xf32>, vector<8x4xf32> -> vector<8x40xf32>
    %c0_22 = arith.constant 0 : index
    %c0_23 = arith.constant 0 : index
    %77 = vector.load %arg6[%c0_22, %c0_23] : memref<8x40xf32, #tpu.memory_space<vmem>>, vector<8x40xf32>
    tpu.vector_store %arg6[%c0_22, %c0_23], %76 {strides = array<i32>} : memref<8x40xf32, #tpu.memory_space<vmem>>, vector<8x40xf32>,
    return
  }
  func.func @transform_0(%arg0: i32) -> (i32, i32) {
    %c0_i32 = arith.constant 0 : i32
    %c0_i32_0 = arith.constant 0 : i32
    return %arg0, %c0_i32 : i32, i32
  }
  func.func @transform_1(%arg0: i32) -> (i32, i32) {
    %c0_i32 = arith.constant 0 : i32
    %c0_i32_0 = arith.constant 0 : i32
    %c0_i32_1 = arith.constant 0 : i32
    return %c0_i32, %c0_i32_0 : i32, i32
  }
  func.func @transform_2(%arg0: i32) -> (i32, i32) {
    %c0_i32 = arith.constant 0 : i32
    %c0_i32_0 = arith.constant 0 : i32
    %c0_i32_1 = arith.constant 0 : i32
    return %c0_i32, %c0_i32_0 : i32, i32
  }
  func.func @transform_3(%arg0: i32) -> (i32, i32) {
    %c0_i32 = arith.constant 0 : i32
    %c0_i32_0 = arith.constant 0 : i32
    %c0_i32_1 = arith.constant 0 : i32
    return %c0_i32, %c0_i32_0 : i32, i32
  }
  func.func @transform_4(%arg0: i32) -> (i32, i32) {
    %c0_i32 = arith.constant 0 : i32
    %c0_i32_0 = arith.constant 0 : i32
    %c0_i32_1 = arith.constant 0 : i32
    return %c0_i32, %c0_i32_0 : i32, i32
  }
  func.func @transform_5(%arg0: i32) -> (i32, i32) {
    %c0_i32 = arith.constant 0 : i32
    %c0_i32_0 = arith.constant 0 : i32
    return %arg0, %c0_i32 : i32, i32
  }
}

</mosaic_0001>

<llo_original>
// kernel: ant_policy_act.1
$region0: #{ant_policy_act.1}
  #allocation0 [shape = 'u32[]', space=smem, size = 0x4, offset = 0x4, fixed_abs, tag = 'smem constant byte address 0x4 - core index']
  #allocation1 [shape = 'u32[72,128]{1,0:T(1,128)}', space=vmem, size = 0x9000, scoped, tag = 'internal scratch']
  %s0 = inlined_call_operand.vmem [shape: f32[8,40], index: 0, kind: input, shape index: {}]
  %s1 = inlined_call_operand.vmem [shape: f32[40,128], index: 1, kind: input, shape index: {}]
  %s2 = inlined_call_operand.vmem [shape: f32[10,128], index: 2, kind: input, shape index: {}]
  %s3 = inlined_call_operand.vmem [shape: f32[32,5], index: 3, kind: input, shape index: {}]
  %s4 = inlined_call_operand.vmem [shape: f32[2,128], index: 4, kind: input, shape index: {}]
  %s5 = inlined_call_operand.vmem [shape: f32[8,40], index: 5, kind: output, shape index: {}]
  %s6 = sld [smem:[#allocation0]]
  $region30: #{ant_policy_act.1} parent=0
    _
  %s8 = ssub.s32 1, %s6
  %s9 = scalar_select 0, %s8, %s6
  // Predicated region
  $region2: #{ant_policy_act.1} parent=0 // pred_check
    _
  $region3: #{ant_policy_act.1} parent=0 // pred_check_branch
    %11 = sbr.rel (0) target = $region5
  $region4: #{ant_policy_act.1} parent=0 // pred_region
    _
  $region5: #{ant_policy_act.1} parent=0 // pred_fallthru
    _
  // Predicated region
  $region6: #{ant_policy_act.1} parent=0 // pred_check
    _
  $region7: #{ant_policy_act.1} parent=0 // pred_check_branch
    %13 = sbr.rel (0) target = $region9
  $region8: #{ant_policy_act.1} parent=0 // pred_region
    _
  $region9: #{ant_policy_act.1} parent=0 // pred_fallthru
    _
  // Predicated region
  $region10: #{ant_policy_act.1} parent=0 // pred_check
    _
  $region11: #{ant_policy_act.1} parent=0 // pred_check_branch
    %15 = sbr.rel (0) target = $region13
  $region12: #{ant_policy_act.1} parent=0 // pred_region
    _
  $region13: #{ant_policy_act.1} parent=0 // pred_fallthru
    _
  // Predicated region
  $region14: #{ant_policy_act.1} parent=0 // pred_check
    _
  $region15: #{ant_policy_act.1} parent=0 // pred_check_branch
    %17 = sbr.rel (0) target = $region17
  $region16: #{ant_policy_act.1} parent=0 // pred_region
    _
  $region17: #{ant_policy_act.1} parent=0 // pred_fallthru
    _
  // Predicated region
  $region18: #{ant_policy_act.1} parent=0 // pred_check
    _
  $region19: #{ant_policy_act.1} parent=0 // pred_check_branch
    %19 = sbr.rel (0) target = $region21
  $region20: #{ant_policy_act.1} parent=0 // pred_region
    _
  $region21: #{ant_policy_act.1} parent=0 // pred_fallthru
    _
  %v20 = vld [vmem:[%s0] sm:$0xff]
  %v21 = vcvt.f32.s32.to.zero.pseudo %v20
  %v22 = vlaneseq
  %v23 = vand.u32 %v22, 127
  %24 = vset.pattern.permute.xlu0 38
  %25 = vperm.xlu0 %24, %v21
  %v26 = vpop.permute.xlu0 %25
  %vm27 = vcmp.eq.s32.totalorder %v23, %v26
  %v28 = vsel %vm27, 1, 0
  %v29 = vcvt.s32.f32 %v28
  %v30 = vld [vmem:[%s4] sm:$0x1]
  %v31 = vld [vmem:[%s4 + $0x1] sm:$0x1]
  %v32 = vld [vmem:[%s1] sm:$0xff]
  %v33 = vld [vmem:[%s1 + $0x8] sm:$0xff]
  %v34 = vld [vmem:[%s1 + $0x10] sm:$0xff]
  %v35 = vld [vmem:[%s1 + $0x18] sm:$0xff]
  %v36 = vld [vmem:[%s1 + $0x20] sm:$0xff]
  %v37 = vld [vmem:[%s2] sm:$0xff]
  %v38 = vld [vmem:[%s2 + $0x8] sm:$0x3]
  %vm39 = vcmask 80896
  %v41 = vsel %vm39, %v29, 0
  %vm43 = vcmask 1041408
  %v45 = vsel %vm43, %v38, 0
  %47 = vmatpush.msra.mxu0 0.0
  %48 = vmatpush.msra.mxu0 0.0
  %49 = vmatpush.msra.mxu0 0.0
  %50 = vmatpush.msra.mxu0 0.0
  %51 = vmatpush.msra.mxu0 0.0
  %52 = vmatpush.msra.mxu0 0.0
  %53 = vmatpush.msra.mxu0 0.0
  %54 = vmatpush.msra.mxu0 0.0
  %55 = vmatpush.msra.mxu0 0.0
  %56 = vmatpush.msra.mxu0 0.0
  %57 = vmatpush.msra.mxu0 0.0
  %58 = vmatpush.msra.mxu0 0.0
  %59 = vmatpush.msra.mxu0 0.0
  %60 = vmatpush.msra.mxu0 0.0
  %61 = vmatpush.msra.mxu0 %v45
  %62 = vmatpush.msra.mxu0 %v37
  %63 = vmatmul.f32.gmra.mxu0 %v41
  %v64 = vpop.f32.mrf.mxu0
  %v65 = vadd.f32 0.0, %v64
  %66 = vdwg.mxu0
  %vm67 = vcmask 326656
  %v69 = vsel %vm67, %v20, 0
  %71 = vmatpush.msra.mxu0 0.0
  %72 = vmatpush.msra.mxu0 0.0
  %73 = vmatpush.msra.mxu0 0.0
  %74 = vmatpush.msra.mxu0 0.0
  %75 = vmatpush.msra.mxu0 0.0
  %76 = vmatpush.msra.mxu0 0.0
  %77 = vmatpush.msra.mxu0 0.0
  %78 = vmatpush.msra.mxu0 0.0
  %79 = vmatpush.msra.mxu0 0.0
  %80 = vmatpush.msra.mxu0 0.0
  %81 = vmatpush.msra.mxu0 0.0
  %82 = vmatpush.msra.mxu0 %v36
  %83 = vmatpush.msra.mxu0 %v35
  %84 = vmatpush.msra.mxu0 %v34
  %85 = vmatpush.msra.mxu0 %v33
  %86 = vmatpush.msra.mxu0 %v32
  %87 = vmatmul.f32.gmra.mxu0 %v69
  %v88 = vpop.f32.mrf.mxu0
  %v89 = vadd.f32 %v65, %v88
  %90 = vdwg.mxu0
  %v91 = vperm.slane %v30, 0
  %v92 = vadd.f32 %v89, %v91
  %v93 = vxor.u32 %v92, 2147483648
  %v94 = vmul.f32 %v93, 1.442695
  %v95 = vpow.pop %v94
  %v96 = vadd.f32 %v95, 1.0
  %v97 = vrcp.pop %v96
  %v98 = vmul.f32 %v96, %v97
  %v99 = vsub.f32 1.0, %v98
  %v100 = vmul.f32 %v97, %v99
  %v101 = vadd.f32 %v97, %v100
  %vm102 = vweird.f32 %v96
  %vm103 = vweird.f32 %v97
  %vm104 = vmor %vm102, %vm103
  %v105 = vsel %vm104, %v97, %v101
  %v106 = vand.u32 2147483647, %v96
  %vm107 = vcmp.eq.f32.partialorder %v106, 8.507059e+37
  %v108 = vand.u32 %v96, 2147483648
  %v109 = vor.u32 1.1754944e-38, %v108
  %v110 = vsel %vm107, %v109, %v105
  %v111 = vmul.f32 1.0, %v110
  %113 = vrot.lane.b32.xlu0 %v92, 32
  %v114 = vpop.permute.xlu0 %113
  %v116 = vmul.f32 %v111, %v114
  %118 = vrot.lane.b32.xlu0 %v116, 64
  %v119 = vpop.permute.xlu0 %118
  %v121 = vadd.f32 %v92, %v119
  %v122 = vtanh.pop %v121
  %v123 = vsub.f32 1.0, %v111
  %125 = vrot.lane.b32.xlu0 %v122, 96
  %v126 = vpop.permute.xlu0 %125
  %v128 = vmul.f32 %v123, %v126
  %129 = vrot.lane.b32.xlu0 %v20, 32
  %v130 = vpop.permute.xlu0 %129
  %v132 = vmul.f32 %v111, %v130
  %v133 = vadd.f32 %v128, %v132
  %v134 = vld [vmem:[%s3] sm:$0xff]
  %v135 = vld [vmem:[%s3 + $0x8] sm:$0xff]
  %v136 = vld [vmem:[%s3 + $0x10] sm:$0xff]
  %v137 = vld [vmem:[%s3 + $0x18] sm:$0xff]
  %v138 = vperm.slane %v31, 0
  %140 = vrot.lane.b32.xlu0 %v133, 96
  %v141 = vpop.permute.xlu0 %140
  %vm142 = vcmask 261120
  %v143 = vsel %vm142, %v141, 0
  %145 = vmatpush.msra.mxu0 0.0
  %146 = vmatpush.msra.mxu0 0.0
  %147 = vmatpush.msra.mxu0 0.0
  %148 = vmatpush.msra.mxu0 0.0
  %149 = vmatpush.msra.mxu0 0.0
  %150 = vmatpush.msra.mxu0 0.0
  %151 = vmatpush.msra.mxu0 0.0
  %152 = vmatpush.msra.mxu0 0.0
  %153 = vmatpush.msra.mxu0 0.0
  %154 = vmatpush.msra.mxu0 0.0
  %155 = vmatpush.msra.mxu0 0.0
  %156 = vmatpush.msra.mxu0 0.0
  %157 = vmatpush.msra.mxu0 %v137
  %158 = vmatpush.msra.mxu0 %v136
  %159 = vmatpush.msra.mxu0 %v135
  %160 = vmatpush.msra.mxu0 %v134
  %161 = vmatmul.f32.gmra.mxu0 %v143
  %v162 = vpop.f32.mrf.mxu0
  %v163 = vadd.f32 %v138, %v162
  %164 = vdwg.mxu0
  %vm165 = vcmask 39944
  %v166 = vsel %vm165, %v163, -inf
  %167 = vmax.xlane.f32.xlu0 %v166
  %v168 = vpop.xlane.xlu0 %167
  %v169 = vsub.f32 %v163, %v168
  %v170 = vmul.f32 %v169, 1.442695
  %v171 = vpow.pop %v170
  %173 = vrot.lane.b32.xlu0 %v171, 127
  %v174 = vpop.permute.xlu0 %173
  %vm176 = vcmask 31744
  %v177 = vsel %vm176, %v174, 0.0
  %178 = vadd.xlane.f32.xlu0 %v177
  %v179 = vpop.xlane.xlu0 %178
  %v180 = vlog2.pop %v179
  %v181 = vmul.f32 %v180, 0.6931472
  %v182 = vsub.f32 %v169, %v181
  %v183 = vmul.f32 %v182, 1.442695
  %v184 = vpow.pop %v183
  %v185 = vmul.f32 %v184, %v182
  %187 = vrot.lane.b32.xlu0 %v185, 127
  %v188 = vpop.permute.xlu0 %187
  %v190 = vsel %vm176, %v188, 0.0
  %191 = vadd.xlane.f32.xlu0 %v190
  %v192 = vpop.xlane.xlu0 %191
  %v193 = vsub.f32 0.0, %v192
  %vm194 = vcmp.ge.f32.partialorder %v163, %v168
  %195 = vrot.lane.b32.xlu0 %v23, 1
  %v196 = vpop.permute.xlu0 %195
  %v197 = vsel %vm194, %v196, 4
  %v198 = vsel %vm165, %v197, 2147483647
  %v199 = vand.u32 %v198, 65535
  %v200 = vshra.s32 %v198, 16
  %v201 = vcvt.s32.f32 %v199
  %v202 = vcvt.s32.f32 %v200
  %203 = vmin.xlane.f32.xlu0 %v202
  %v204 = vpop.xlane.xlu0 %203
  %vm205 = vcmp.eq.f32.partialorder %v202, %v204
  %v206 = vsel %vm205, %v201, inf
  %207 = vmin.xlane.f32.xlu0 %v206
  %v208 = vpop.xlane.xlu0 %207
  %v209 = vcvt.f32.s32 %v208
  %v210 = vcvt.f32.s32 %v204
  %v211 = vshll.u32 %v210, 16
  %v212 = vadd.s32 %v211, %v209
  %vm213 = vcmp.eq.s32.totalorder %v23, %v212
  %215 = vrot.lane.b32.xlu0 %v182, 127
  %v216 = vpop.permute.xlu0 %215
  %v218 = vsel %vm213, %v216, 0.0
  %v219 = vsel %vm176, %v218, 0.0
  %220 = vadd.xlane.f32.xlu0 %v219
  %v221 = vpop.xlane.xlu0 %220
  %v222 = vcvt.s32.f32 %v212
  %225 = vrot.lane.b32.xlu0 %v163, 32
  %v226 = vpop.permute.xlu0 %225
  %228 = vrot.lane.b32.xlu0 %v182, 35
  %v229 = vpop.permute.xlu0 %228
  %v231 = vsel %vm142, %v141, %v226
  %vm232 = vcmask 269312
  %v233 = vsel %vm232, %v231, %v193
  %vm234 = vcmask 277504
  %v235 = vsel %vm234, %v233, %v221
  %vm236 = vcmask 285696
  %v237 = vsel %vm236, %v235, %v222
  %vm238 = vcmask 293888
  %v239 = vsel %vm238, %v237, %v229
  %240 = vst.msk [vmem:[%s5] sm:$0xff] %vm67, %v239
  // Predicated region
  $region22: #{ant_policy_act.1} parent=0 // pred_check
    _
  $region23: #{ant_policy_act.1} parent=0 // pred_check_branch
    %242 = sbr.rel (0) target = $region25
  $region24: #{ant_policy_act.1} parent=0 // pred_region
    _
  $region25: #{ant_policy_act.1} parent=0 // pred_fallthru
    _
  // Predicated region
  $region26: #{ant_policy_act.1} parent=0 // pred_check
    _
  $region27: #{ant_policy_act.1} parent=0 // pred_check_branch
    %244 = sbr.rel (0) target = $region29
  $region28: #{ant_policy_act.1} parent=0 // pred_region
    _
  $region29: #{ant_policy_act.1} parent=0 // pred_fallthru
    _

</llo_original>
